<compile_context>
chip_gen: v7x
topology: tpu7x:2x2x1
jax: 0.10.0
libtpu: 0.0.40
codegen_flags: <defaults>
</compile_context>

<pallas_src>
import functools

import jax
import jax.numpy as jnp
from jax.experimental import pallas as pl
from jax.experimental.pallas import tpu as pltpu


def _layernorm_kernel(x_ref, w_ref, b_ref, o_ref, *, eps, bias_free):
    """One (1, C, T) block: normalize over C for T spatial positions.

    x_ref: (1, C, T)   w_ref/b_ref: (C, 1)   o_ref: (1, C, T)
    """
    x = x_ref[0].astype(jnp.float32)                    # (C, T), stats in f32
    c = x.shape[0]
    inv_c = 1.0 / float(c)

    mu = jnp.sum(x, axis=0, keepdims=True) * inv_c      # (1, T)
    xc = x - mu
    var = jnp.sum(xc * xc, axis=0, keepdims=True) * inv_c   # unbiased=False
    rstd = jax.lax.rsqrt(var + eps)                     # EUP rsqrt, lane-dense

    w = w_ref[...]                                      # (C, 1) broadcasts over lanes
    if bias_free:
        # BiasFree_LayerNorm: x / sqrt(var+eps) * weight  (x NOT centered)
        y = x * rstd * w
    else:
        # WithBias_LayerNorm: (x-mu) / sqrt(var+eps) * weight + bias
        y = xc * rstd * w + b_ref[...]
    o_ref[0] = y.astype(o_ref.dtype)


def _choose_tile(hw, max_tile=2048):
    """Spatial tile along the lane axis: multiple of 128 dividing hw, or full hw."""
    if hw % 128 != 0:
        return hw                     # full-extent block (allowed by Pallas)
    t = min(hw, max_tile)
    while hw % t != 0:
        t -= 128
    return t


def layernorm_nchw(x, weight, bias, *, eps=1e-5, bias_free=False):
    """LayerNorm over channels of an NCHW tensor (== to_4d(body(to_3d(x)), h, w))."""
    B, C, H, W = x.shape
    hw = H * W
    x3 = x.reshape(B, C, hw)                            # free reshape, no transpose

    t = _choose_tile(hw)
    grid = (B, hw // t)

    w2 = weight.reshape(C, 1).astype(jnp.float32)
    if bias is None:
        b2 = jnp.zeros((C, 1), jnp.float32)
    else:
        b2 = bias.reshape(C, 1).astype(jnp.float32)

    kernel = functools.partial(_layernorm_kernel, eps=eps, bias_free=bias_free)

    out = pl.pallas_call(
        kernel,
        out_shape=jax.ShapeDtypeStruct((B, C, hw), x.dtype),
        grid_spec=pltpu.PrefetchScalarGridSpec(
            num_scalar_prefetch=0,
            grid=grid,
            in_specs=[
                pl.BlockSpec((1, C, t), lambda b, s: (b, 0, s)),   # x tile
                pl.BlockSpec((C, 1), lambda b, s: (0, 0)),         # weight
                pl.BlockSpec((C, 1), lambda b, s: (0, 0)),         # bias (zeros if BiasFree)
            ],
            out_specs=pl.BlockSpec((1, C, t), lambda b, s: (b, 0, s)),
        ),
        compiler_params=pltpu.CompilerParams(
            # every block is independent -> both grid axes parallel (megacore)
            dimension_semantics=("parallel", "parallel"),
        ),
    )(x3, w2, b2)
    return out.reshape(B, C, H, W)


class LayerNormPallas:
    """Mirror of the PyTorch LayerNorm(dim, LayerNorm_type) module."""

    def __init__(self, dim, layernorm_type):
        self.dim = dim
        self.bias_free = (layernorm_type == "BiasFree")
        self.weight = jnp.ones((dim,), jnp.float32)
        self.bias = None if self.bias_free else jnp.zeros((dim,), jnp.float32)

    def __call__(self, x_nchw):
        return layernorm_nchw(x_nchw, self.weight, self.bias,
                              eps=1e-5, bias_free=self.bias_free)


def _ref_layernorm(x, weight, bias, *, eps=1e-5, bias_free=False):
    """Pure-JAX reference matching the PyTorch module semantics."""
    xf = x.astype(jnp.float32)
    mu = xf.mean(axis=1, keepdims=True)
    var = ((xf - mu) ** 2).mean(axis=1, keepdims=True)
    rstd = 1.0 / jnp.sqrt(var + eps)
    w = weight.reshape(1, -1, 1, 1)
    if bias_free:
        return (xf * rstd * w).astype(x.dtype)
    b = bias.reshape(1, -1, 1, 1)
    return ((xf - mu) * rstd * w + b).astype(x.dtype)


if __name__ == "__main__":
    key = jax.random.PRNGKey(0)
    kx, kw, kb = jax.random.split(key, 3)

    B, C, H, W = 2, 48, 16, 16          # dim=48 (typical), spatial 16x16
    x = jax.random.normal(kx, (B, C, H, W), jnp.float32)
    weight = 1.0 + 0.1 * jax.random.normal(kw, (C,), jnp.float32)
    bias = 0.1 * jax.random.normal(kb, (C,), jnp.float32)

    # WithBias variant
    ln_wb = LayerNormPallas(C, "WithBias")
    ln_wb.weight, ln_wb.bias = weight, bias
    y_wb = jax.jit(ln_wb.__call__)(x)
    jax.block_until_ready(y_wb)
    ref_wb = _ref_layernorm(x, weight, bias, bias_free=False)
    assert y_wb.shape == (B, C, H, W), y_wb.shape
    assert bool(jnp.all(jnp.isfinite(y_wb)))
    assert bool(jnp.allclose(y_wb, ref_wb, atol=1e-4, rtol=1e-4))

    # BiasFree variant
    ln_bf = LayerNormPallas(C, "BiasFree")
    ln_bf.weight = weight
    y_bf = jax.jit(ln_bf.__call__)(x)
    jax.block_until_ready(y_bf)
    ref_bf = _ref_layernorm(x, weight, None, bias_free=True)
    assert y_bf.shape == (B, C, H, W), y_bf.shape
    assert bool(jnp.allclose(y_bf, ref_bf, atol=1e-4, rtol=1e-4))

    print("KERNEL_OK")
</pallas_src>

<mosaic_0001>
module attributes {stable_mosaic.version = 11 : i64} {
  func.func @_layernorm_kernel(%arg0: i32, %arg1: i32, %arg2: memref<1x48x256xf32, #tpu.memory_space<vmem>>, %arg3: memref<48x1xf32, #tpu.memory_space<vmem>>, %arg4: memref<48x1xf32, #tpu.memory_space<vmem>>, %arg5: memref<1x48x256xf32, #tpu.memory_space<vmem>>) attributes {dimension_semantics = [#tpu.dimension_semantics<parallel>, #tpu.dimension_semantics<parallel>], iteration_bounds = array<i64: 2, 1>, scalar_prefetch = 0 : i64, scratch_operands = 0 : i64, tpu.core_type = #tpu.core_type<tc>, window_params = [{transform_indices = @transform_0, window_bounds = array<i64: 1, 48, 256>}, {pipeline_mode = #tpu.pipeline_mode<synchronous>, transform_indices = @transform_1, window_bounds = array<i64: 48, 1>}, {pipeline_mode = #tpu.pipeline_mode<synchronous>, transform_indices = @transform_2, window_bounds = array<i64: 48, 1>}, {transform_indices = @transform_3, window_bounds = array<i64: 1, 48, 256>}]} {
    %c0 = arith.constant 0 : index
    %c0_0 = arith.constant 0 : index
    %c0_1 = arith.constant 0 : index
    %0 = vector.load %arg2[%c0, %c0_0, %c0_1] : memref<1x48x256xf32, #tpu.memory_space<vmem>>, vector<1x48x256xf32>
    %1 = vector.shape_cast %0 : vector<1x48x256xf32> to vector<48x256xf32>
    %cst = arith.constant dense<0.000000e+00> : vector<256xf32>
    %2 = vector.multi_reduction <add>, %1, %cst [0] : vector<48x256xf32> to vector<256xf32>
    %3 = vector.shape_cast %2 : vector<256xf32> to vector<1x256xf32>
    %cst_2 = arith.constant 0.020833334 : f32
    %4 = vector.broadcast %cst_2 : f32 to vector<1x256xf32>
    %5 = arith.mulf %3, %4 : vector<1x256xf32>
    %6 = vector.broadcast %5 : vector<1x256xf32> to vector<48x256xf32>
    %7 = arith.subf %1, %6 : vector<48x256xf32>
    %8 = arith.mulf %7, %7 : vector<48x256xf32>
    %cst_3 = arith.constant dense<0.000000e+00> : vector<256xf32>
    %9 = vector.multi_reduction <add>, %8, %cst_3 [0] : vector<48x256xf32> to vector<256xf32>
    %10 = vector.shape_cast %9 : vector<256xf32> to vector<1x256xf32>
    %cst_4 = arith.constant 0.020833334 : f32
    %11 = vector.broadcast %cst_4 : f32 to vector<1x256xf32>
    %12 = arith.mulf %10, %11 : vector<1x256xf32>
    %cst_5 = arith.constant 9.99999974E-6 : f32
    %13 = vector.broadcast %cst_5 : f32 to vector<1x256xf32>
    %14 = arith.addf %12, %13 : vector<1x256xf32>
    %15 = math.rsqrt %14 : vector<1x256xf32>
    %c0_6 = arith.constant 0 : index
    %c0_7 = arith.constant 0 : index
    %16 = vector.load %arg3[%c0_6, %c0_7] : memref<48x1xf32, #tpu.memory_space<vmem>>, vector<48x1xf32>
    %17 = vector.broadcast %15 : vector<1x256xf32> to vector<48x256xf32>
    %18 = arith.mulf %7, %17 : vector<48x256xf32>
    %19 = vector.broadcast %16 : vector<48x1xf32> to vector<48x256xf32>
    %20 = arith.mulf %18, %19 : vector<48x256xf32>
    %c0_8 = arith.constant 0 : index
    %c0_9 = arith.constant 0 : index
    %21 = vector.load %arg4[%c0_8, %c0_9] : memref<48x1xf32, #tpu.memory_space<vmem>>, vector<48x1xf32>
    %22 = vector.broadcast %21 : vector<48x1xf32> to vector<48x256xf32>
    %23 = arith.addf %20, %22 : vector<48x256xf32>
    %c0_10 = arith.constant 0 : index
    %c0_11 = arith.constant 0 : index
    %c0_12 = arith.constant 0 : index
    %24 = vector.load %arg5[%c0_10, %c0_11, %c0_12] : memref<1x48x256xf32, #tpu.memory_space<vmem>>, vector<1x48x256xf32>
    %25 = vector.shape_cast %24 : vector<1x48x256xf32> to vector<48x256xf32>
    %26 = vector.shape_cast %23 : vector<48x256xf32> to vector<1x48x256xf32>
    tpu.vector_store %arg5[%c0_10, %c0_11, %c0_12], %26 {strides = array<i32>} : memref<1x48x256xf32, #tpu.memory_space<vmem>>, vector<1x48x256xf32>,
    return
  }
  func.func @transform_0(%arg0: i32, %arg1: i32) -> (i32, i32, i32) {
    %c0_i32 = arith.constant 0 : i32
    %c0_i32_0 = arith.constant 0 : i32
    return %arg0, %c0_i32, %arg1 : i32, i32, i32
  }
  func.func @transform_1(%arg0: i32, %arg1: i32) -> (i32, i32) {
    %c0_i32 = arith.constant 0 : i32
    %c0_i32_0 = arith.constant 0 : i32
    %c0_i32_1 = arith.constant 0 : i32
    return %c0_i32, %c0_i32_0 : i32, i32
  }
  func.func @transform_2(%arg0: i32, %arg1: i32) -> (i32, i32) {
    %c0_i32 = arith.constant 0 : i32
    %c0_i32_0 = arith.constant 0 : i32
    %c0_i32_1 = arith.constant 0 : i32
    return %c0_i32, %c0_i32_0 : i32, i32
  }
  func.func @transform_3(%arg0: i32, %arg1: i32) -> (i32, i32, i32) {
    %c0_i32 = arith.constant 0 : i32
    %c0_i32_0 = arith.constant 0 : i32
    return %arg0, %c0_i32, %arg1 : i32, i32, i32
  }
}

</mosaic_0001>

<llo_original>
// kernel: a_call__.1
$region0: #{a_call__.1}
  #allocation0 [shape = 'u32[]', space=smem, size = 0x4, offset = 0x4, fixed_abs, tag = 'smem constant byte address 0x4 - core index']
  #allocation1 [shape = 'u32[144,128]{1,0:T(1,128)}', space=vmem, size = 0x12000, scoped, tag = 'internal scratch']
  %s0 = inlined_call_operand.vmem [shape: f32[2,48,256], index: 0, kind: input, shape index: {}]
  %s1 = inlined_call_operand.vmem [shape: f32[48,1], index: 1, kind: input, shape index: {}]
  %s2 = inlined_call_operand.vmem [shape: f32[48,1], index: 2, kind: input, shape index: {}]
  %s3 = inlined_call_operand.vmem [shape: f32[2,48,256], index: 3, kind: output, shape index: {}]
  %s4 = sld [smem:[#allocation0]]
  $region45: #{a_call__.1} parent=0
    _
  %s6 = ssub.s32 1, %s4
  %s7 = scalar_select 0, %s6, %s4
  loop: start=0, step=1, limit=4
  $region2: #{a_call__.1} parent=0 // loop_pre_header
    _
  $region3: #{a_call__.1} parent=0 // loop_header
    %s9 = sphi 0, %s13
    %p10 = scmp.ge.s32.totalorder %s9, 4
    %s16 = sphi 0, %s28
    %s17 = sphi 0, %s24
    %s18 = sphi 0, %s16
    %s19 = sphi 0, %s17
    %s20 = sphi 0, %s18
    %s21 = sphi 0, %s19
    %s33 = sphi 0, %s35
    %s36 = sphi 0, %s33
    %s37 = sphi 0, %s36
    %s53 = sphi 0, %s37
    %s57 = sphi 0, %s57
    %s59 = sphi 0, %s57
    %s60 = sphi 0, %s59
    %s74 = sphi 0, %s60
    %s78 = sphi 0, %s78
    %s80 = sphi 0, %s78
    %s81 = sphi 0, %s80
    %s95 = sphi 0, %s81
    %s103 = sphi 0, %s105
    %s106 = sphi 0, %s103
    %s107 = sphi 0, %s106
    %s123 = sphi 0, %s107
  $region4: #{a_call__.1} parent=0 // loop_header_branch
    %12 = sbr.rel (%p10) target = $region8
  $region5: #{a_call__.1} parent=0 // loop_body
    %s14 = ssub.s32 %s9, 1
    %s15 = ssub.s32 %s9, 2
    %s22 = sadd.s32 1, %s17
    %p23 = scmp.ge.s32.totalorder %s22, 1
    %s24 = scalar_select %p23, 0, %s22
    %s25 = sadd.s32 1, %s16
    %s26 = scalar_select %p23, %s25, %s16
    %p27 = scmp.ge.s32.totalorder %s26, 2
    %s28 = scalar_select %p27, 0, %s26
    %s29 = ssub.s32 %s16, %s28
    %s30 = ssub.s32 %s17, %s24
    %s31 = sor.u32 %s29, %s30
    %p32 = scmp.eq.s32.totalorder %s31, 0
    %s34 = sadd.s32 %s33, 1
    %s35 = scalar_select %p32, %s33, %s34
    %p38 = pneg %p32
    %p39 = scmp.eq.s32.totalorder %s9, 1
    %p40 = por %p38, %p39
    %p41 = scmp.ne.s32.totalorder %s33, %s36
    %p42 = scmp.eq.s32.totalorder %s9, 0
    %p43 = por %p41, %p42
    %p44 = scmp.ne.s32.totalorder %s33, %s36
    %p45 = scmp.eq.s32.totalorder %s14, 1
    %p46 = por %p44, %p45
    %p47 = scmp.ne.s32.totalorder %s36, %s37
    %p48 = scmp.eq.s32.totalorder %s14, 0
    %p49 = por %p47, %p48
    %p50 = scmp.ne.s32.totalorder %s36, %s37
    %p51 = scmp.eq.s32.totalorder %s15, 1
    %p52 = por %p50, %p51
    %p54 = scmp.ne.s32.totalorder %s37, %s53
    %p55 = scmp.eq.s32.totalorder %s15, 0
    %p56 = por %p54, %p55
    %s58 = sadd.s32 %s57, 1
    %p61 = scmp.eq.s32.totalorder %s9, 1
    %p62 = scmp.ne.s32.totalorder %s57, %s59
    %p63 = scmp.eq.s32.totalorder %s9, 0
    %p64 = por %p62, %p63
    %p65 = scmp.ne.s32.totalorder %s57, %s59
    %p66 = scmp.eq.s32.totalorder %s14, 1
    %p67 = por %p65, %p66
    %p68 = scmp.ne.s32.totalorder %s59, %s60
    %p69 = scmp.eq.s32.totalorder %s14, 0
    %p70 = por %p68, %p69
    %p71 = scmp.ne.s32.totalorder %s59, %s60
    %p72 = scmp.eq.s32.totalorder %s15, 1
    %p73 = por %p71, %p72
    %p75 = scmp.ne.s32.totalorder %s60, %s74
    %p76 = scmp.eq.s32.totalorder %s15, 0
    %p77 = por %p75, %p76
    %s79 = sadd.s32 %s78, 1
    %p82 = scmp.eq.s32.totalorder %s9, 1
    %p83 = scmp.ne.s32.totalorder %s78, %s80
    %p84 = scmp.eq.s32.totalorder %s9, 0
    %p85 = por %p83, %p84
    %p86 = scmp.ne.s32.totalorder %s78, %s80
    %p87 = scmp.eq.s32.totalorder %s14, 1
    %p88 = por %p86, %p87
    %p89 = scmp.ne.s32.totalorder %s80, %s81
    %p90 = scmp.eq.s32.totalorder %s14, 0
    %p91 = por %p89, %p90
    %p92 = scmp.ne.s32.totalorder %s80, %s81
    %p93 = scmp.eq.s32.totalorder %s15, 1
    %p94 = por %p92, %p93
    %p96 = scmp.ne.s32.totalorder %s81, %s95
    %p97 = scmp.eq.s32.totalorder %s15, 0
    %p98 = por %p96, %p97
    %s99 = ssub.s32 %s16, %s28
    %s100 = ssub.s32 %s17, %s24
    %s101 = sor.u32 %s99, %s100
    %p102 = scmp.eq.s32.totalorder %s101, 0
    %s104 = sadd.s32 %s103, 1
    %s105 = scalar_select %p102, %s103, %s104
    %p108 = pneg %p102
    %p109 = scmp.eq.s32.totalorder %s9, 1
    %p110 = por %p108, %p109
    %p111 = scmp.ne.s32.totalorder %s103, %s106
    %p112 = scmp.eq.s32.totalorder %s9, 0
    %p113 = por %p111, %p112
    %p114 = scmp.ne.s32.totalorder %s103, %s106
    %p115 = scmp.eq.s32.totalorder %s14, 1
    %p116 = por %p114, %p115
    %p117 = scmp.ne.s32.totalorder %s106, %s107
    %p118 = scmp.eq.s32.totalorder %s14, 0
    %p119 = por %p117, %p118
    %p120 = scmp.ne.s32.totalorder %s106, %s107
    %p121 = scmp.eq.s32.totalorder %s15, 1
    %p122 = por %p120, %p121
    %p124 = scmp.ne.s32.totalorder %s107, %s123
    %p125 = scmp.eq.s32.totalorder %s15, 0
    %p126 = por %p124, %p125
    %p127 = scmp.le.s32.totalorder 1, %s9
    %p128 = scmp.lt.s32.totalorder %s9, 3
    %p129 = pnand %p127, %p128
    %p130 = pneg %p129
    // Predicated region
    $region9: #{a_call__.1} parent=5 // pred_check
      _
    $region10: #{a_call__.1} parent=5 // pred_check_branch
      %132 = sbr.rel (%p129) target = $region12
    $region11: #{a_call__.1} parent=5 // pred_region
      %s133 = ssub.s32 %s9, 1
      // Predicated region
      $region13: #{a_call__.1} parent=11 // pred_check
        %p134 = pneg %p70
      $region14: #{a_call__.1} parent=11 // pred_check_branch
        %136 = sbr.rel (%p134) target = $region16
      $region15: #{a_call__.1} parent=11 // pred_region
        _
      $region16: #{a_call__.1} parent=11 // pred_fallthru
        _
      // Predicated region
      $region17: #{a_call__.1} parent=11 // pred_check
        %p137 = pneg %p91
      $region18: #{a_call__.1} parent=11 // pred_check_branch
        %139 = sbr.rel (%p137) target = $region20
      $region19: #{a_call__.1} parent=11 // pred_region
        _
      $region20: #{a_call__.1} parent=11 // pred_fallthru
        _
    $region12: #{a_call__.1} parent=5 // pred_fallthru
      _
    %p140 = scmp.lt.s32.totalorder %s9, 2
    // Predicated region
    $region21: #{a_call__.1} parent=5 // pred_check
      %p141 = pneg %p140
    $region22: #{a_call__.1} parent=5 // pred_check_branch
      %143 = sbr.rel (%p141) target = $region24
    $region23: #{a_call__.1} parent=5 // pred_region
      // Predicated region
      $region25: #{a_call__.1} parent=23 // pred_check
        %p144 = pneg %p43
      $region26: #{a_call__.1} parent=23 // pred_check_branch
        %146 = sbr.rel (%p144) target = $region28
      $region27: #{a_call__.1} parent=23 // pred_region
        %s147 = smul.u32 2, %s17
        %p148 = scmp.lt.s32.totalorder %s16, 1
        %s149 = scalar_select %p148, %s16, 1
        %p150 = scmp.lt.s32.totalorder %s147, 1
        %s151 = scalar_select %p150, %s147, 1
        %s152 = smul.addr %s149, 12
        %s153 = sadd.s32 %s151, %s152
        %s154 = smul.addr %s153, 8
        %s155 = scalar_lea.vmem %s0, %s154
        %s156 = smul.u32 2, %s17
      $region28: #{a_call__.1} parent=23 // pred_fallthru
        _
    $region24: #{a_call__.1} parent=5 // pred_fallthru
      _
    %p157 = scmp.le.s32.totalorder 1, %s9
    %p158 = scmp.lt.s32.totalorder %s9, 3
    %p159 = pnand %p157, %p158
    %p160 = pneg %p159
    // Predicated region
    $region29: #{a_call__.1} parent=5 // pred_check
      _
    $region30: #{a_call__.1} parent=5 // pred_check_branch
      %162 = sbr.rel (%p159) target = $region32
    $region31: #{a_call__.1} parent=5 // pred_region
      %s163 = ssub.s32 %s9, 1
      %s164 = smul.u32 2, %s19
      %p165 = scmp.lt.s32.totalorder %s18, 1
      %s166 = scalar_select %p165, %s18, 1
      %p167 = scmp.lt.s32.totalorder %s164, 1
      %s168 = scalar_select %p167, %s164, 1
      %s169 = smul.addr %s166, 12
      %s170 = sadd.s32 %s168, %s169
      %s171 = smul.addr %s170, 8
      %s172 = scalar_lea.vmem %s0, %s171
      %p173 = pneg %p49
      %p174 = pneg %p46
      %p175 = pneg %p70
      %p176 = pneg %p67
      %p177 = pneg %p91
      %p178 = pneg %p88
      %p179 = pneg %p119
      %p180 = pneg %p116
      %s181 = smul.u32 2, %s19
      %p182 = scmp.lt.s32.totalorder %s18, 1
      %s183 = scalar_select %p182, %s18, 1
      %p184 = scmp.lt.s32.totalorder %s181, 1
      %s185 = scalar_select %p184, %s181, 1
      %s186 = smul.addr %s183, 12
      %s187 = sadd.s32 %s185, %s186
      %s188 = smul.addr %s187, 8
      %s189 = scalar_lea.vmem %s3, %s188
      %s190 = smul.u32 2, %s19
      %p191 = scmp.lt.s32.totalorder %s18, 1
      %s192 = scalar_select %p191, %s18, 1
      %p193 = scmp.lt.s32.totalorder %s190, 1
      %s194 = scalar_select %p193, %s190, 1
      %s195 = smul.addr %s192, 12
      %s196 = sadd.s32 %s194, %s195
      %s197 = smul.addr %s196, 8
      %s198 = scalar_lea.vmem %s0, %s197
      %s199 = smul.u32 2, %s19
      %s200 = smul.u32 2, %s19
      %p201 = scmp.lt.s32.totalorder %s18, 1
      %s202 = scalar_select %p201, %s18, 1
      %p203 = scmp.lt.s32.totalorder %s200, 1
      %s204 = scalar_select %p203, %s200, 1
      %s205 = smul.addr %s202, 12
      %s206 = sadd.s32 %s204, %s205
      %s207 = smul.addr %s206, 8
      %s208 = scalar_lea.vmem %s3, %s207
      %s209 = smul.u32 2, %s19
      %v210 = vld [vmem:[%s198] sm:$0xff]
      %v211 = vld [vmem:[%s198 + $0x8] sm:$0xff]
      %v212 = vld [vmem:[%s198 + $0x10] sm:$0xff]
      %v213 = vld [vmem:[%s198 + $0x18] sm:$0xff]
      %v214 = vld [vmem:[%s198 + $0x20] sm:$0xff]
      %v215 = vld [vmem:[%s198 + $0x28] sm:$0xff]
      %v216 = vld [vmem:[%s198 + $0x30] sm:$0xff]
      %v217 = vld [vmem:[%s198 + $0x38] sm:$0xff]
      %v218 = vld [vmem:[%s198 + $0x40] sm:$0xff]
      %v219 = vld [vmem:[%s198 + $0x48] sm:$0xff]
      %v220 = vld [vmem:[%s198 + $0x50] sm:$0xff]
      %v221 = vld [vmem:[%s198 + $0x58] sm:$0xff]
      %v222 = vadd.f32 %v210, %v212
      %v223 = vadd.f32 %v222, %v214
      %v224 = vadd.f32 %v223, %v216
      %v225 = vadd.f32 %v224, %v218
      %v226 = vadd.f32 %v225, %v220
      %v227 = vrot.slane %v226, 4
      %v228 = vadd.f32 %v226, %v227
      %v229 = vrot.slane %v228, 2
      %v230 = vadd.f32 %v228, %v229
      %v231 = vrot.slane %v230, 1
      %v232 = vadd.f32 %v230, %v231
      %v233 = vadd.f32 %v211, %v213
      %v234 = vadd.f32 %v233, %v215
      %v235 = vadd.f32 %v234, %v217
      %v236 = vadd.f32 %v235, %v219
      %v237 = vadd.f32 %v236, %v221
      %v238 = vrot.slane %v237, 4
      %v239 = vadd.f32 %v237, %v238
      %v240 = vrot.slane %v239, 2
      %v241 = vadd.f32 %v239, %v240
      %v242 = vrot.slane %v241, 1
      %v243 = vadd.f32 %v241, %v242
      %v244 = vmul.f32 %v232, 0.020833334
      %v245 = vmul.f32 %v243, 0.020833334
      %v246 = vsub.f32 %v210, %v244
      %v247 = vsub.f32 %v211, %v245
      %v248 = vsub.f32 %v212, %v244
      %v249 = vsub.f32 %v213, %v245
      %v250 = vsub.f32 %v214, %v244
      %v251 = vsub.f32 %v215, %v245
      %v252 = vsub.f32 %v216, %v244
      %v253 = vsub.f32 %v217, %v245
      %v254 = vsub.f32 %v218, %v244
      %v255 = vsub.f32 %v219, %v245
      %v256 = vsub.f32 %v220, %v244
      %v257 = vsub.f32 %v221, %v245
      %v258 = vmul.f32 %v246, %v246
      %v259 = vmul.f32 %v247, %v247
      %v260 = vmul.f32 %v248, %v248
      %v261 = vmul.f32 %v249, %v249
      %v262 = vmul.f32 %v250, %v250
      %v263 = vmul.f32 %v251, %v251
      %v264 = vmul.f32 %v252, %v252
      %v265 = vmul.f32 %v253, %v253
      %v266 = vmul.f32 %v254, %v254
      %v267 = vmul.f32 %v255, %v255
      %v268 = vmul.f32 %v256, %v256
      %v269 = vmul.f32 %v257, %v257
      %v270 = vadd.f32 %v258, %v260
      %v271 = vadd.f32 %v270, %v262
      %v272 = vadd.f32 %v271, %v264
      %v273 = vadd.f32 %v272, %v266
      %v274 = vadd.f32 %v273, %v268
      %v275 = vrot.slane %v274, 4
      %v276 = vadd.f32 %v274, %v275
      %v277 = vrot.slane %v276, 2
      %v278 = vadd.f32 %v276, %v277
      %v279 = vrot.slane %v278, 1
      %v280 = vadd.f32 %v278, %v279
      %v281 = vadd.f32 %v259, %v261
      %v282 = vadd.f32 %v281, %v263
      %v283 = vadd.f32 %v282, %v265
      %v284 = vadd.f32 %v283, %v267
      %v285 = vadd.f32 %v284, %v269
      %v286 = vrot.slane %v285, 4
      %v287 = vadd.f32 %v285, %v286
      %v288 = vrot.slane %v287, 2
      %v289 = vadd.f32 %v287, %v288
      %v290 = vrot.slane %v289, 1
      %v291 = vadd.f32 %v289, %v290
      %v292 = vmul.f32 %v280, 0.020833334
      %v293 = vmul.f32 %v291, 0.020833334
      %v294 = vadd.f32 %v292, 1e-05
      %v295 = vadd.f32 %v293, 1e-05
      %v296 = vrsqrt.pop %v294
      %v297 = vrsqrt.pop %v295
      %v298 = vld [vmem:[%s1] sm:$0xff]
      %v299 = vld [vmem:[%s1 + $0x8] sm:$0xff]
      %v300 = vld [vmem:[%s1 + $0x10] sm:$0xff]
      %v301 = vld [vmem:[%s1 + $0x18] sm:$0xff]
      %v302 = vld [vmem:[%s1 + $0x20] sm:$0xff]
      %v303 = vld [vmem:[%s1 + $0x28] sm:$0xff]
      %v304 = vmul.f32 %v246, %v296
      %v305 = vmul.f32 %v247, %v297
      %v306 = vmul.f32 %v248, %v296
      %v307 = vmul.f32 %v249, %v297
      %v308 = vmul.f32 %v250, %v296
      %v309 = vmul.f32 %v251, %v297
      %v310 = vmul.f32 %v252, %v296
      %v311 = vmul.f32 %v253, %v297
      %v312 = vmul.f32 %v254, %v296
      %v313 = vmul.f32 %v255, %v297
      %v314 = vmul.f32 %v256, %v296
      %v315 = vmul.f32 %v257, %v297
      %317 = vset.pattern.permute.xlu0 0
      %318 = vperm.xlu0 %317, %v298
      %v319 = vpop.permute.xlu0 %318
      %322 = vset.pattern.permute.xlu0 0
      %323 = vperm.xlu0 %322, %v299
      %v324 = vpop.permute.xlu0 %323
      %327 = vset.pattern.permute.xlu0 0
      %328 = vperm.xlu0 %327, %v300
      %v329 = vpop.permute.xlu0 %328
      %332 = vset.pattern.permute.xlu0 0
      %333 = vperm.xlu0 %332, %v301
      %v334 = vpop.permute.xlu0 %333
      %337 = vset.pattern.permute.xlu0 0
      %338 = vperm.xlu0 %337, %v302
      %v339 = vpop.permute.xlu0 %338
      %342 = vset.pattern.permute.xlu0 0
      %343 = vperm.xlu0 %342, %v303
      %v344 = vpop.permute.xlu0 %343
      %v346 = vmul.f32 %v304, %v319
      %v347 = vmul.f32 %v305, %v319
      %v348 = vmul.f32 %v306, %v324
      %v349 = vmul.f32 %v307, %v324
      %v350 = vmul.f32 %v308, %v329
      %v351 = vmul.f32 %v309, %v329
      %v352 = vmul.f32 %v310, %v334
      %v353 = vmul.f32 %v311, %v334
      %v354 = vmul.f32 %v312, %v339
      %v355 = vmul.f32 %v313, %v339
      %v356 = vmul.f32 %v314, %v344
      %v357 = vmul.f32 %v315, %v344
      %v358 = vld [vmem:[%s2] sm:$0xff]
      %v359 = vld [vmem:[%s2 + $0x8] sm:$0xff]
      %v360 = vld [vmem:[%s2 + $0x10] sm:$0xff]
      %v361 = vld [vmem:[%s2 + $0x18] sm:$0xff]
      %v362 = vld [vmem:[%s2 + $0x20] sm:$0xff]
      %v363 = vld [vmem:[%s2 + $0x28] sm:$0xff]
      %365 = vset.pattern.permute.xlu0 0
      %366 = vperm.xlu0 %365, %v358
      %v367 = vpop.permute.xlu0 %366
      %370 = vset.pattern.permute.xlu0 0
      %371 = vperm.xlu0 %370, %v359
      %v372 = vpop.permute.xlu0 %371
      %375 = vset.pattern.permute.xlu0 0
      %376 = vperm.xlu0 %375, %v360
      %v377 = vpop.permute.xlu0 %376
      %380 = vset.pattern.permute.xlu0 0
      %381 = vperm.xlu0 %380, %v361
      %v382 = vpop.permute.xlu0 %381
      %385 = vset.pattern.permute.xlu0 0
      %386 = vperm.xlu0 %385, %v362
      %v387 = vpop.permute.xlu0 %386
      %390 = vset.pattern.permute.xlu0 0
      %391 = vperm.xlu0 %390, %v363
      %v392 = vpop.permute.xlu0 %391
      %v394 = vadd.f32 %v346, %v367
      %v395 = vadd.f32 %v347, %v367
      %v396 = vadd.f32 %v348, %v372
      %v397 = vadd.f32 %v349, %v372
      %v398 = vadd.f32 %v350, %v377
      %v399 = vadd.f32 %v351, %v377
      %v400 = vadd.f32 %v352, %v382
      %v401 = vadd.f32 %v353, %v382
      %v402 = vadd.f32 %v354, %v387
      %v403 = vadd.f32 %v355, %v387
      %v404 = vadd.f32 %v356, %v392
      %v405 = vadd.f32 %v357, %v392
      %406 = vst [vmem:[%s208] sm:$0xff] %v394
      %407 = vst [vmem:[%s208 + $0x8] sm:$0xff] %v395
      %408 = vst [vmem:[%s208 + $0x10] sm:$0xff] %v396
      %409 = vst [vmem:[%s208 + $0x18] sm:$0xff] %v397
      %410 = vst [vmem:[%s208 + $0x20] sm:$0xff] %v398
      %411 = vst [vmem:[%s208 + $0x28] sm:$0xff] %v399
      %412 = vst [vmem:[%s208 + $0x30] sm:$0xff] %v400
      %413 = vst [vmem:[%s208 + $0x38] sm:$0xff] %v401
      %414 = vst [vmem:[%s208 + $0x40] sm:$0xff] %v402
      %415 = vst [vmem:[%s208 + $0x48] sm:$0xff] %v403
      %416 = vst [vmem:[%s208 + $0x50] sm:$0xff] %v404
      %417 = vst [vmem:[%s208 + $0x58] sm:$0xff] %v405
      %s418 = smul.u32 2, %s19
      %p419 = scmp.lt.s32.totalorder %s18, 1
      %s420 = scalar_select %p419, %s18, 1
      %p421 = scmp.lt.s32.totalorder %s418, 1
      %s422 = scalar_select %p421, %s418, 1
      %s423 = smul.addr %s420, 12
      %s424 = sadd.s32 %s422, %s423
      %s425 = smul.addr %s424, 8
      %s426 = scalar_lea.vmem %s3, %s425
      // Predicated region
      $region33: #{a_call__.1} parent=31 // pred_check
        %p427 = pneg %p116
      $region34: #{a_call__.1} parent=31 // pred_check_branch
        %429 = sbr.rel (%p427) target = $region36
      $region35: #{a_call__.1} parent=31 // pred_region
        %s430 = smul.u32 2, %s19
      $region36: #{a_call__.1} parent=31 // pred_fallthru
        _
    $region32: #{a_call__.1} parent=5 // pred_fallthru
      _
    %p431 = scmp.le.s32.totalorder 2, %s9
    // Predicated region
    $region37: #{a_call__.1} parent=5 // pred_check
      %p432 = pneg %p431
    $region38: #{a_call__.1} parent=5 // pred_check_branch
      %434 = sbr.rel (%p432) target = $region40
    $region39: #{a_call__.1} parent=5 // pred_region
      %s435 = ssub.s32 %s9, 2
      // Predicated region
      $region41: #{a_call__.1} parent=39 // pred_check
        %p436 = pneg %p122
      $region42: #{a_call__.1} parent=39 // pred_check_branch
        %438 = sbr.rel (%p436) target = $region44
      $region43: #{a_call__.1} parent=39 // pred_region
        %s439 = smul.u32 2, %s21
        %p440 = scmp.lt.s32.totalorder %s20, 1
        %s441 = scalar_select %p440, %s20, 1
        %p442 = scmp.lt.s32.totalorder %s439, 1
        %s443 = scalar_select %p442, %s439, 1
        %s444 = smul.addr %s441, 12
        %s445 = sadd.s32 %s443, %s444
        %s446 = smul.addr %s445, 8
        %s447 = scalar_lea.vmem %s3, %s446
      $region44: #{a_call__.1} parent=39 // pred_fallthru
        _
    $region40: #{a_call__.1} parent=5 // pred_fallthru
      _
  $region6: #{a_call__.1} parent=0 // loop_footer
    %s13 = sadd.s32 1, %s9
  $region7: #{a_call__.1} parent=0 // loop_footer_branch
    %8 = sbr.rel target = $region3
  $region8: #{a_call__.1} parent=0 // loop_exit
    _

</llo_original>
